<compile_context>
chip_gen: v6e
topology: v6e:2x2x1
jax: 0.10.0
libtpu: 0.0.40
codegen_flags: <defaults>
</compile_context>

<pallas_src>
import functools

import jax
import jax.numpy as jnp
from jax.experimental import pallas as pl
from jax.experimental.pallas import tpu as pltpu


# ----------------------------------------------------------------------------
# grad_reverse: identity forward, -beta * grad backward (matches GradReverse).
# ----------------------------------------------------------------------------
@functools.partial(jax.custom_vjp, nondiff_argnums=(1, 2))
def grad_reverse(x, beta=1.0, reverse=True):
    return x


def _grad_reverse_fwd(x, beta, reverse):
    return x, None


def _grad_reverse_bwd(beta, reverse, _, g):
    scale = -beta if reverse else beta
    return (g * scale,)


grad_reverse.defvjp(_grad_reverse_fwd, _grad_reverse_bwd)


# ----------------------------------------------------------------------------
# Pallas kernel: fused per-pixel MLP head, pixels on the lane axis.
#   h = relu(w1a^T @ z + w1b^T @ z_up + b1);  o = sum_h(w2 * h) + b2
# ----------------------------------------------------------------------------
def _head_kernel(z_ref, zu_ref, w1at_ref, w1bt_ref, b1_ref, w2_ref, b2_ref,
                 o_ref):
    # z_ref, zu_ref : (NB, C, TILE)   f32  (cast to bf16 here: free VPU filler)
    # w1at_ref      : (HIDDEN, C)     bf16 (acts on z)
    # w1bt_ref      : (HIDDEN, C)     bf16 (acts on z_up)
    # b1_ref        : (HIDDEN, 1)     f32
    # w2_ref        : (HIDDEN, 1)     f32
    # b2_ref        : (1,)            f32  (SMEM scalar)
    # o_ref         : (NB, 1, TILE)   f32
    b2 = b2_ref[0]
    nb = z_ref.shape[0]
    for n in range(nb):  # static unroll over the (small) batch block
        z = z_ref[n].astype(jnp.bfloat16)         # (C, TILE)
        zu = zu_ref[n].astype(jnp.bfloat16)
        # Channel concat is never materialized: split weight, two small dots.
        h = jnp.dot(w1at_ref[...], z, preferred_element_type=jnp.float32)
        h = h + jnp.dot(w1bt_ref[...], zu, preferred_element_type=jnp.float32)
        h = jnp.maximum(h + b1_ref[...], 0.0)      # (HIDDEN, TILE) f32
        # Layer 2 on VPU+XLU: a (1,HIDDEN)x(HIDDEN,TILE) MXU op would be ~99%
        # sublane padding; broadcast-mul + sublane reduce is exact f32 and free
        # next to the HBM-bound DMA.
        o = jnp.sum(h * w2_ref[...], axis=0, keepdims=True)   # (1, TILE)
        o_ref[n] = o + b2


def _round_up(x, m):
    return ((x + m - 1) // m) * m


def _choose_blocks(N, C, P, *, max_tile=4096, input_vmem_budget=8 << 20):
    """Pick (batch block NB, pixel tile).

    Tiles are multiples of 128 (or == P when P < 128).  Double-buffered f32
    activation traffic per step is kept within `input_vmem_budget`, so the
    kernel fits v7x's smaller VMEM as well as v5e/v6e.  If the grid would
    collapse to a single block (idle second TensorCore on v7x), the pixel
    tile is halved.
    """
    nb = max(1, min(N, 8))
    if P < 128:
        return nb, P
    tile = min(max_tile, _round_up(P, 128))
    # 2 inputs x 2 pipeline buffers x f32 bytes per (nb, C, tile) block.
    lane_cap = input_vmem_budget // (2 * 2 * nb * C * 4)
    lane_cap = max(128, (lane_cap // 128) * 128)
    tile = min(tile, lane_cap)
    if pl.cdiv(N, nb) * pl.cdiv(P, tile) < 2 and P >= 256:
        tile = max(128, _round_up(pl.cdiv(P, 2), 128))
    return nb, tile


def _head_forward_pallas(z, z_up, w1, b1, w2, b2, *, max_tile=4096):
    """z, z_up: (N, C, H, W) f32.  w1: (2C, HIDDEN), b1: (1, HIDDEN),
    w2: (HIDDEN, 1), b2: (1, 1).  Returns (N, 1, H, W) f32."""
    N, C, Hh, Ww = z.shape
    P = Hh * Ww
    HIDDEN = w1.shape[1]
    assert w1.shape[0] == 2 * C, "head weight expects concat(z, z_up) channels"

    # Weight prep (tiny arrays). Split the concat weight (top C rows act on z,
    # bottom C on z_up) and transpose to (HIDDEN, C) for pixels-on-lanes.
    w1a_t = jnp.transpose(w1[:C, :]).astype(jnp.bfloat16)       # (HIDDEN, C)
    w1b_t = jnp.transpose(w1[C:, :]).astype(jnp.bfloat16)       # (HIDDEN, C)
    b1_col = jnp.reshape(b1, (HIDDEN, 1)).astype(jnp.float32)
    w2_col = jnp.reshape(w2, (HIDDEN, 1)).astype(jnp.float32)
    b2_s = jnp.reshape(b2, (1,)).astype(jnp.float32)            # SMEM scalar

    # NCHW -> (N, C, H*W): pure reshape, no cast, no pad, no extra HBM pass.
    z_ncp = z.reshape(N, C, P)
    zu_ncp = z_up.reshape(N, C, P)

    nb, tile = _choose_blocks(N, C, P, max_tile=max_tile)
    grid = (pl.cdiv(N, nb), pl.cdiv(P, tile))

    out = pl.pallas_call(
        _head_kernel,
        out_shape=jax.ShapeDtypeStruct((N, 1, P), jnp.float32),
        grid_spec=pltpu.PrefetchScalarGridSpec(
            num_scalar_prefetch=0,
            grid=grid,
            in_specs=[
                pl.BlockSpec((nb, C, tile), lambda b, p: (b, 0, p)),
                pl.BlockSpec((nb, C, tile), lambda b, p: (b, 0, p)),
                pl.BlockSpec((HIDDEN, C), lambda b, p: (0, 0)),
                pl.BlockSpec((HIDDEN, C), lambda b, p: (0, 0)),
                pl.BlockSpec((HIDDEN, 1), lambda b, p: (0, 0)),
                pl.BlockSpec((HIDDEN, 1), lambda b, p: (0, 0)),
                pl.BlockSpec(memory_space=pltpu.MemorySpace.SMEM),
            ],
            out_specs=pl.BlockSpec((nb, 1, tile), lambda b, p: (b, 0, p)),
        ),
        compiler_params=pltpu.CompilerParams(
            dimension_semantics=("parallel", "parallel"),
        ),
    )(z_ncp, zu_ncp, w1a_t, w1b_t, b1_col, w2_col, b2_s)

    # (N, 1, P) -> NCHW output, again a pure reshape.
    return out.reshape(N, 1, Hh, Ww)


# ----------------------------------------------------------------------------
# Pure-JAX reference head (also used as the backward of the Pallas head so the
# gradient-reversal semantics are exercisable end-to-end).
# ----------------------------------------------------------------------------
def _head_ref(z, z_up, w1, b1, w2, b2):
    N, C, Hh, Ww = z.shape
    x = jnp.concatenate([z, z_up], axis=1)
    rows = jnp.transpose(x, (0, 2, 3, 1)).reshape(-1, 2 * C)
    h = jnp.maximum(
        jnp.dot(rows, w1, precision=jax.lax.Precision.HIGHEST) + b1, 0.0)
    o = jnp.dot(h, w2, precision=jax.lax.Precision.HIGHEST) + b2
    return jnp.transpose(o.reshape(N, Hh, Ww, 1), (0, 3, 1, 2))


@jax.custom_vjp
def head_apply(z, z_up, w1, b1, w2, b2):
    return _head_forward_pallas(z, z_up, w1, b1, w2, b2)


def _head_apply_fwd(z, z_up, w1, b1, w2, b2):
    return _head_forward_pallas(z, z_up, w1, b1, w2, b2), (z, z_up, w1, b1,
                                                           w2, b2)


def _head_apply_bwd(res, g):
    # TODO(synk): backward recomputes via pure JAX in f32 (no fused Pallas bwd
    # kernel); forward's bf16 first-layer rounding is not mirrored in the grad.
    _, vjp = jax.vjp(_head_ref, *res)
    return vjp(g)


head_apply.defvjp(_head_apply_fwd, _head_apply_bwd)


# ----------------------------------------------------------------------------
# Discriminator module (forward pass, matches the PyTorch wrapper semantics)
# ----------------------------------------------------------------------------
class Discriminator:
    def __init__(self, params, reverse=True):
        self.params = params  # dict: w1 (2C,H), b1 (1,H), w2 (H,1), b2 (1,1)
        self.beta = 0.0
        self.reverse = reverse

    def set_beta(self, beta):
        self.beta = beta

    def _head(self, z, z_up=None):
        if z_up is None:
            # Head is defined over concat(z, z_up); treat missing z_up as zeros.
            z_up = jnp.zeros_like(z)
        p = self.params
        return head_apply(z, z_up, p["w1"], p["b1"], p["w2"], p["b2"])

    def forward(self, z, z_up=None, use_grad_reverse=True):
        if use_grad_reverse:
            z = grad_reverse(z, self.beta, True)
            if z_up is not None:
                z_up = grad_reverse(z_up, self.beta, True)
        return self._head(z, z_up=z_up)

    __call__ = forward


# ----------------------------------------------------------------------------
# Reference matching the kernel's in-kernel bf16 rounding of z/z_up/w1.
# ----------------------------------------------------------------------------
def _head_ref_mixed(z, z_up, params):
    r = lambda a: a.astype(jnp.bfloat16).astype(jnp.float32)
    return _head_ref(r(z), r(z_up), r(params["w1"]), params["b1"],
                     params["w2"], params["b2"])


if __name__ == "__main__":
    key = jax.random.PRNGKey(0)
    kz, kzu, kw1, kb1, kw2, kb2 = jax.random.split(key, 6)

    N, C, Hs, Ws = 2, 4, 16, 16     # z: NCHW
    HIDDEN = 32
    C_IN = 2 * C                    # head sees concat(z, z_up)

    z = jax.random.normal(kz, (N, C, Hs, Ws), dtype=jnp.float32)
    z_up = jax.random.normal(kzu, (N, C, Hs, Ws), dtype=jnp.float32)

    params = {
        "w1": jax.random.normal(kw1, (C_IN, HIDDEN), dtype=jnp.float32) * 0.1,
        "b1": jax.random.normal(kb1, (1, HIDDEN), dtype=jnp.float32) * 0.1,
        "w2": jax.random.normal(kw2, (HIDDEN, 1), dtype=jnp.float32) * 0.1,
        "b2": jax.random.normal(kb2, (1, 1), dtype=jnp.float32) * 0.1,
    }

    disc = Discriminator(params, reverse=True)
    disc.set_beta(0.5)

    # Forward pass through the Pallas head.
    out = disc(z, z_up=z_up, use_grad_reverse=True)
    out = jax.block_until_ready(out)
    assert out.shape == (N, 1, Hs, Ws), out.shape

    ref = _head_ref_mixed(z, z_up, params)
    assert jnp.allclose(out, ref, atol=1e-4, rtol=1e-4), "forward mismatch"

    # Gradient-reversal semantics: d/dz sum(disc(z)) == -beta * d/dz sum(head(z)).
    g_disc = jax.grad(lambda a: jnp.sum(disc(a, z_up=z_up)))(z)
    g_ref = jax.grad(lambda a: jnp.sum(
        _head_ref(a, z_up, params["w1"], params["b1"], params["w2"],
                  params["b2"])))(z)
    g_disc = jax.block_until_ready(g_disc)
    assert jnp.allclose(g_disc, -0.5 * g_ref, atol=1e-5, rtol=1e-5), \
        "grad_reverse mismatch"

    print("KERNEL_OK")
</pallas_src>

<mosaic_0001>
module attributes {stable_mosaic.version = 11 : i64} {
  func.func @_head_kernel(%arg0: i32, %arg1: i32, %arg2: memref<2x4x128xf32, #tpu.memory_space<vmem>>, %arg3: memref<2x4x128xf32, #tpu.memory_space<vmem>>, %arg4: memref<32x4xbf16, #tpu.memory_space<vmem>>, %arg5: memref<32x4xbf16, #tpu.memory_space<vmem>>, %arg6: memref<32x1xf32, #tpu.memory_space<vmem>>, %arg7: memref<32x1xf32, #tpu.memory_space<vmem>>, %arg8: memref<1xf32, #tpu.memory_space<smem>>, %arg9: memref<2x1x128xf32, #tpu.memory_space<vmem>>) attributes {dimension_semantics = [#tpu.dimension_semantics<parallel>, #tpu.dimension_semantics<parallel>], iteration_bounds = array<i64: 1, 2>, scalar_prefetch = 0 : i64, scratch_operands = 0 : i64, tpu.core_type = #tpu.core_type<tc>, window_params = [{transform_indices = @transform_0, window_bounds = array<i64: 2, 4, 128>}, {transform_indices = @transform_1, window_bounds = array<i64: 2, 4, 128>}, {pipeline_mode = #tpu.pipeline_mode<synchronous>, transform_indices = @transform_2, window_bounds = array<i64: 32, 4>}, {pipeline_mode = #tpu.pipeline_mode<synchronous>, transform_indices = @transform_3, window_bounds = array<i64: 32, 4>}, {pipeline_mode = #tpu.pipeline_mode<synchronous>, transform_indices = @transform_4, window_bounds = array<i64: 32, 1>}, {pipeline_mode = #tpu.pipeline_mode<synchronous>, transform_indices = @transform_5, window_bounds = array<i64: 32, 1>}, {transform_indices = @transform_6, window_bounds = array<i64: 1>}, {transform_indices = @transform_7, window_bounds = array<i64: 2, 1, 128>}]} {
    %c0 = arith.constant 0 : index
    %0 = memref.load %arg8[%c0] : memref<1xf32, #tpu.memory_space<smem>>
    %c0_0 = arith.constant 0 : index
    %c0_1 = arith.constant 0 : index
    %c0_2 = arith.constant 0 : index
    %1 = vector.load %arg2[%c0_0, %c0_1, %c0_2] : memref<2x4x128xf32, #tpu.memory_space<vmem>>, vector<1x4x128xf32>
    %2 = vector.shape_cast %1 : vector<1x4x128xf32> to vector<4x128xf32>
    %3 = arith.truncf %2 : vector<4x128xf32> to vector<4x128xbf16>
    %c0_3 = arith.constant 0 : index
    %c0_4 = arith.constant 0 : index
    %c0_5 = arith.constant 0 : index
    %4 = vector.load %arg3[%c0_3, %c0_4, %c0_5] : memref<2x4x128xf32, #tpu.memory_space<vmem>>, vector<1x4x128xf32>
    %5 = vector.shape_cast %4 : vector<1x4x128xf32> to vector<4x128xf32>
    %6 = arith.truncf %5 : vector<4x128xf32> to vector<4x128xbf16>
    %c0_6 = arith.constant 0 : index
    %c0_7 = arith.constant 0 : index
    %7 = vector.load %arg4[%c0_6, %c0_7] : memref<32x4xbf16, #tpu.memory_space<vmem>>, vector<32x4xbf16>
    %cst = arith.constant dense<0.000000e+00> : vector<32x128xf32>
    %8 = tpu.matmul %7, %3, %cst {dimension_numbers = #tpu.dot_dimension_numbers<[1], [0], [0], [1], [0, 0, 1, 1], [], []>} : vector<32x4xbf16>, vector<4x128xbf16>, vector<32x128xf32> -> vector<32x128xf32>
    %c0_8 = arith.constant 0 : index
    %c0_9 = arith.constant 0 : index
    %9 = vector.load %arg5[%c0_8, %c0_9] : memref<32x4xbf16, #tpu.memory_space<vmem>>, vector<32x4xbf16>
    %cst_10 = arith.constant dense<0.000000e+00> : vector<32x128xf32>
    %10 = tpu.matmul %9, %6, %cst_10 {dimension_numbers = #tpu.dot_dimension_numbers<[1], [0], [0], [1], [0, 0, 1, 1], [], []>} : vector<32x4xbf16>, vector<4x128xbf16>, vector<32x128xf32> -> vector<32x128xf32>
    %11 = arith.addf %8, %10 : vector<32x128xf32>
    %c0_11 = arith.constant 0 : index
    %c0_12 = arith.constant 0 : index
    %12 = vector.load %arg6[%c0_11, %c0_12] : memref<32x1xf32, #tpu.memory_space<vmem>>, vector<32x1xf32>
    %13 = vector.broadcast %12 : vector<32x1xf32> to vector<32x128xf32>
    %14 = arith.addf %11, %13 : vector<32x128xf32>
    %cst_13 = arith.constant 0.000000e+00 : f32
    %15 = vector.broadcast %cst_13 : f32 to vector<32x128xf32>
    %16 = arith.maximumf %14, %15 : vector<32x128xf32>
    %c0_14 = arith.constant 0 : index
    %c0_15 = arith.constant 0 : index
    %17 = vector.load %arg7[%c0_14, %c0_15] : memref<32x1xf32, #tpu.memory_space<vmem>>, vector<32x1xf32>
    %18 = vector.broadcast %17 : vector<32x1xf32> to vector<32x128xf32>
    %19 = arith.mulf %16, %18 : vector<32x128xf32>
    %cst_16 = arith.constant dense<0.000000e+00> : vector<128xf32>
    %20 = vector.multi_reduction <add>, %19, %cst_16 [0] : vector<32x128xf32> to vector<128xf32>
    %21 = vector.shape_cast %20 : vector<128xf32> to vector<1x128xf32>
    %22 = vector.broadcast %0 : f32 to vector<1x128xf32>
    %23 = arith.addf %21, %22 : vector<1x128xf32>
    %c0_17 = arith.constant 0 : index
    %c0_18 = arith.constant 0 : index
    %c0_19 = arith.constant 0 : index
    %24 = vector.load %arg9[%c0_17, %c0_18, %c0_19] : memref<2x1x128xf32, #tpu.memory_space<vmem>>, vector<1x1x128xf32>
    %25 = vector.shape_cast %24 : vector<1x1x128xf32> to vector<1x128xf32>
    %26 = vector.shape_cast %23 : vector<1x128xf32> to vector<1x1x128xf32>
    tpu.vector_store %arg9[%c0_17, %c0_18, %c0_19], %26 {strides = array<i32>} : memref<2x1x128xf32, #tpu.memory_space<vmem>>, vector<1x1x128xf32>,
    %c1 = arith.constant 1 : index
    %c0_20 = arith.constant 0 : index
    %c0_21 = arith.constant 0 : index
    %27 = vector.load %arg2[%c1, %c0_20, %c0_21] : memref<2x4x128xf32, #tpu.memory_space<vmem>>, vector<1x4x128xf32>
    %28 = vector.shape_cast %27 : vector<1x4x128xf32> to vector<4x128xf32>
    %29 = arith.truncf %28 : vector<4x128xf32> to vector<4x128xbf16>
    %c1_22 = arith.constant 1 : index
    %c0_23 = arith.constant 0 : index
    %c0_24 = arith.constant 0 : index
    %30 = vector.load %arg3[%c1_22, %c0_23, %c0_24] : memref<2x4x128xf32, #tpu.memory_space<vmem>>, vector<1x4x128xf32>
    %31 = vector.shape_cast %30 : vector<1x4x128xf32> to vector<4x128xf32>
    %32 = arith.truncf %31 : vector<4x128xf32> to vector<4x128xbf16>
    %c0_25 = arith.constant 0 : index
    %c0_26 = arith.constant 0 : index
    %33 = vector.load %arg4[%c0_25, %c0_26] : memref<32x4xbf16, #tpu.memory_space<vmem>>, vector<32x4xbf16>
    %cst_27 = arith.constant dense<0.000000e+00> : vector<32x128xf32>
    %34 = tpu.matmul %33, %29, %cst_27 {dimension_numbers = #tpu.dot_dimension_numbers<[1], [0], [0], [1], [0, 0, 1, 1], [], []>} : vector<32x4xbf16>, vector<4x128xbf16>, vector<32x128xf32> -> vector<32x128xf32>
    %c0_28 = arith.constant 0 : index
    %c0_29 = arith.constant 0 : index
    %35 = vector.load %arg5[%c0_28, %c0_29] : memref<32x4xbf16, #tpu.memory_space<vmem>>, vector<32x4xbf16>
    %cst_30 = arith.constant dense<0.000000e+00> : vector<32x128xf32>
    %36 = tpu.matmul %35, %32, %cst_30 {dimension_numbers = #tpu.dot_dimension_numbers<[1], [0], [0], [1], [0, 0, 1, 1], [], []>} : vector<32x4xbf16>, vector<4x128xbf16>, vector<32x128xf32> -> vector<32x128xf32>
    %37 = arith.addf %34, %36 : vector<32x128xf32>
    %c0_31 = arith.constant 0 : index
    %c0_32 = arith.constant 0 : index
    %38 = vector.load %arg6[%c0_31, %c0_32] : memref<32x1xf32, #tpu.memory_space<vmem>>, vector<32x1xf32>
    %39 = vector.broadcast %38 : vector<32x1xf32> to vector<32x128xf32>
    %40 = arith.addf %37, %39 : vector<32x128xf32>
    %cst_33 = arith.constant 0.000000e+00 : f32
    %41 = vector.broadcast %cst_33 : f32 to vector<32x128xf32>
    %42 = arith.maximumf %40, %41 : vector<32x128xf32>
    %c0_34 = arith.constant 0 : index
    %c0_35 = arith.constant 0 : index
    %43 = vector.load %arg7[%c0_34, %c0_35] : memref<32x1xf32, #tpu.memory_space<vmem>>, vector<32x1xf32>
    %44 = vector.broadcast %43 : vector<32x1xf32> to vector<32x128xf32>
    %45 = arith.mulf %42, %44 : vector<32x128xf32>
    %cst_36 = arith.constant dense<0.000000e+00> : vector<128xf32>
    %46 = vector.multi_reduction <add>, %45, %cst_36 [0] : vector<32x128xf32> to vector<128xf32>
    %47 = vector.shape_cast %46 : vector<128xf32> to vector<1x128xf32>
    %48 = vector.broadcast %0 : f32 to vector<1x128xf32>
    %49 = arith.addf %47, %48 : vector<1x128xf32>
    %c1_37 = arith.constant 1 : index
    %c0_38 = arith.constant 0 : index
    %c0_39 = arith.constant 0 : index
    %50 = vector.load %arg9[%c1_37, %c0_38, %c0_39] : memref<2x1x128xf32, #tpu.memory_space<vmem>>, vector<1x1x128xf32>
    %51 = vector.shape_cast %50 : vector<1x1x128xf32> to vector<1x128xf32>
    %52 = vector.shape_cast %49 : vector<1x128xf32> to vector<1x1x128xf32>
    tpu.vector_store %arg9[%c1_37, %c0_38, %c0_39], %52 {strides = array<i32>} : memref<2x1x128xf32, #tpu.memory_space<vmem>>, vector<1x1x128xf32>,
    return
  }
  func.func @transform_0(%arg0: i32, %arg1: i32) -> (i32, i32, i32) {
    %c0_i32 = arith.constant 0 : i32
    %c0_i32_0 = arith.constant 0 : i32
    return %arg0, %c0_i32, %arg1 : i32, i32, i32
  }
  func.func @transform_1(%arg0: i32, %arg1: i32) -> (i32, i32, i32) {
    %c0_i32 = arith.constant 0 : i32
    %c0_i32_0 = arith.constant 0 : i32
    return %arg0, %c0_i32, %arg1 : i32, i32, i32
  }
  func.func @transform_2(%arg0: i32, %arg1: i32) -> (i32, i32) {
    %c0_i32 = arith.constant 0 : i32
    %c0_i32_0 = arith.constant 0 : i32
    %c0_i32_1 = arith.constant 0 : i32
    return %c0_i32, %c0_i32_0 : i32, i32
  }
  func.func @transform_3(%arg0: i32, %arg1: i32) -> (i32, i32) {
    %c0_i32 = arith.constant 0 : i32
    %c0_i32_0 = arith.constant 0 : i32
    %c0_i32_1 = arith.constant 0 : i32
    return %c0_i32, %c0_i32_0 : i32, i32
  }
  func.func @transform_4(%arg0: i32, %arg1: i32) -> (i32, i32) {
    %c0_i32 = arith.constant 0 : i32
    %c0_i32_0 = arith.constant 0 : i32
    %c0_i32_1 = arith.constant 0 : i32
    return %c0_i32, %c0_i32_0 : i32, i32
  }
  func.func @transform_5(%arg0: i32, %arg1: i32) -> (i32, i32) {
    %c0_i32 = arith.constant 0 : i32
    %c0_i32_0 = arith.constant 0 : i32
    %c0_i32_1 = arith.constant 0 : i32
    return %c0_i32, %c0_i32_0 : i32, i32
  }
  func.func @transform_6(%arg0: i32, %arg1: i32) -> i32 {
    %c0_i32 = arith.constant 0 : i32
    %c0_i32_0 = arith.constant 0 : i32
    return %c0_i32 : i32
  }
  func.func @transform_7(%arg0: i32, %arg1: i32) -> (i32, i32, i32) {
    %c0_i32 = arith.constant 0 : i32
    %c0_i32_0 = arith.constant 0 : i32
    return %arg0, %c0_i32, %arg1 : i32, i32, i32
  }
}

</mosaic_0001>

<llo_original>
// kernel: tpu_custom_call.1
$region0: #{tpu_custom_call.1}
  #allocation0 [shape = 'u32[]', space=smem, size = 0x4, offset = 0x4, fixed_abs, tag = 'smem constant byte address 0x4 - core index']
  #allocation1 [shape = 'u32[144,128]{1,0:T(1,128)}', space=vmem, size = 0x12000, scoped, tag = 'internal scratch']
  #allocation2 [shape = 'f32[1]{0:T(128)S(6)}', space=smem, size = 0x200, scoped, tag = 'scoped memory for tpu_custom_call.1']
  %s0 = inlined_call_operand.vmem [shape: f32[2,4,256], index: 0, kind: input, shape index: {}]
  %s1 = inlined_call_operand.vmem [shape: f32[2,4,256], index: 1, kind: input, shape index: {}]
  %s2 = inlined_call_operand.vmem [shape: bf16[32,4], index: 2, kind: input, shape index: {}]
  %s3 = inlined_call_operand.vmem [shape: bf16[32,4], index: 3, kind: input, shape index: {}]
  %s4 = inlined_call_operand.vmem [shape: f32[32,1], index: 4, kind: input, shape index: {}]
  %s5 = inlined_call_operand.vmem [shape: f32[32,1], index: 5, kind: input, shape index: {}]
  %s6 = inlined_call_operand.<no memory space> [shape: f32[1], index: 6, kind: input, shape index: {}]
  %s7 = inlined_call_operand.hbm [shape: f32[2,1,256], index: 7, kind: output, shape index: {}]
  %s8 = sld [smem:[#allocation0]]
  $region143: #{tpu_custom_call.1} parent=0
    _
  %s10 = ssub.s32 1, %s8
  %s11 = scalar_select 0, %s10, %s8
  %12 = sst [smem:[#allocation2]] %s6
  $region1: #{tpu_custom_call.1} parent=0
    #allocation3 [shape = 'u8[8192]{0}', space=vmem, size = 0x2000, scoped, tag = 'input window, operand 0']
    #allocation4 [shape = 'u8[8192]{0}', space=vmem, size = 0x2000, scoped, tag = 'input window, operand 1']
    #allocation5 [shape = 'u8[2048]{0}', space=vmem, size = 0x800, scoped, tag = 'output window, operand 0']
    #allocation6 [shape = 's32[2]{0}', space=sflag, size = 0x8, scoped, tag = 'scoped memory for tpu_custom_call.1']
    %13 = vsyncpa [#allocation6], 0
    %s14 = scalar_lea.sflag [#allocation6], 1
    %15 = vsyncpa %s14, 0
    loop: start=0, step=1, limit=4
    $region2: #{tpu_custom_call.1} parent=1 // loop_pre_header
      _
    $region3: #{tpu_custom_call.1} parent=1 // loop_header
      %s17 = sphi 0, %s21
      %p18 = scmp.ge.s32.totalorder %s17, 4
      %s24 = sphi 0, %s36
      %s25 = sphi 0, %s32
      %s26 = sphi 0, %s24
      %s27 = sphi 0, %s25
      %s28 = sphi 0, %s26
      %s29 = sphi 0, %s27
      %s41 = sphi 0, %s43
      %s44 = sphi 0, %s41
      %s45 = sphi 0, %s44
      %s61 = sphi 0, %s45
      %s69 = sphi 0, %s71
      %s72 = sphi 0, %s69
      %s73 = sphi 0, %s72
      %s89 = sphi 0, %s73
      %s93 = sphi 0, %s93
      %s95 = sphi 0, %s93
      %s96 = sphi 0, %s95
      %s110 = sphi 0, %s96
      %s114 = sphi 0, %s114
      %s116 = sphi 0, %s114
      %s117 = sphi 0, %s116
      %s131 = sphi 0, %s117
      %s135 = sphi 0, %s135
      %s137 = sphi 0, %s135
      %s138 = sphi 0, %s137
      %s152 = sphi 0, %s138
      %s156 = sphi 0, %s156
      %s158 = sphi 0, %s156
      %s159 = sphi 0, %s158
      %s173 = sphi 0, %s159
      %s177 = sphi 0, %s177
      %s179 = sphi 0, %s177
      %s180 = sphi 0, %s179
      %s194 = sphi 0, %s180
      %s202 = sphi 0, %s204
      %s205 = sphi 0, %s202
      %s206 = sphi 0, %s205
      %s222 = sphi 0, %s206
    $region4: #{tpu_custom_call.1} parent=1 // loop_header_branch
      %20 = sbr.rel (%p18) target = $region8
    $region5: #{tpu_custom_call.1} parent=1 // loop_body
      %s22 = ssub.s32 %s17, 1
      %s23 = ssub.s32 %s17, 2
      %s30 = sadd.s32 1, %s25
      %p31 = scmp.ge.s32.totalorder %s30, 2
      %s32 = scalar_select %p31, 0, %s30
      %s33 = sadd.s32 1, %s24
      %s34 = scalar_select %p31, %s33, %s24
      %p35 = scmp.ge.s32.totalorder %s34, 1
      %s36 = scalar_select %p35, 0, %s34
      %s37 = ssub.s32 %s24, %s36
      %s38 = ssub.s32 %s25, %s32
      %s39 = sor.u32 %s37, %s38
      %p40 = scmp.eq.s32.totalorder %s39, 0
      %s42 = sadd.s32 %s41, 1
      %s43 = scalar_select %p40, %s41, %s42
      %p46 = pneg %p40
      %p47 = scmp.eq.s32.totalorder %s17, 1
      %p48 = por %p46, %p47
      %p49 = scmp.ne.s32.totalorder %s41, %s44
      %p50 = scmp.eq.s32.totalorder %s17, 0
      %p51 = por %p49, %p50
      %p52 = scmp.ne.s32.totalorder %s41, %s44
      %p53 = scmp.eq.s32.totalorder %s22, 1
      %p54 = por %p52, %p53
      %p55 = scmp.ne.s32.totalorder %s44, %s45
      %p56 = scmp.eq.s32.totalorder %s22, 0
      %p57 = por %p55, %p56
      %p58 = scmp.ne.s32.totalorder %s44, %s45
      %p59 = scmp.eq.s32.totalorder %s23, 1
      %p60 = por %p58, %p59
      %p62 = scmp.ne.s32.totalorder %s45, %s61
      %p63 = scmp.eq.s32.totalorder %s23, 0
      %p64 = por %p62, %p63
      %s65 = ssub.s32 %s24, %s36
      %s66 = ssub.s32 %s25, %s32
      %s67 = sor.u32 %s65, %s66
      %p68 = scmp.eq.s32.totalorder %s67, 0
      %s70 = sadd.s32 %s69, 1
      %s71 = scalar_select %p68, %s69, %s70
      %p74 = pneg %p68
      %p75 = scmp.eq.s32.totalorder %s17, 1
      %p76 = por %p74, %p75
      %p77 = scmp.ne.s32.totalorder %s69, %s72
      %p78 = scmp.eq.s32.totalorder %s17, 0
      %p79 = por %p77, %p78
      %p80 = scmp.ne.s32.totalorder %s69, %s72
      %p81 = scmp.eq.s32.totalorder %s22, 1
      %p82 = por %p80, %p81
      %p83 = scmp.ne.s32.totalorder %s72, %s73
      %p84 = scmp.eq.s32.totalorder %s22, 0
      %p85 = por %p83, %p84
      %p86 = scmp.ne.s32.totalorder %s72, %s73
      %p87 = scmp.eq.s32.totalorder %s23, 1
      %p88 = por %p86, %p87
      %p90 = scmp.ne.s32.totalorder %s73, %s89
      %p91 = scmp.eq.s32.totalorder %s23, 0
      %p92 = por %p90, %p91
      %s94 = sadd.s32 %s93, 1
      %p97 = scmp.eq.s32.totalorder %s17, 1
      %p98 = scmp.ne.s32.totalorder %s93, %s95
      %p99 = scmp.eq.s32.totalorder %s17, 0
      %p100 = por %p98, %p99
      %p101 = scmp.ne.s32.totalorder %s93, %s95
      %p102 = scmp.eq.s32.totalorder %s22, 1
      %p103 = por %p101, %p102
      %p104 = scmp.ne.s32.totalorder %s95, %s96
      %p105 = scmp.eq.s32.totalorder %s22, 0
      %p106 = por %p104, %p105
      %p107 = scmp.ne.s32.totalorder %s95, %s96
      %p108 = scmp.eq.s32.totalorder %s23, 1
      %p109 = por %p107, %p108
      %p111 = scmp.ne.s32.totalorder %s96, %s110
      %p112 = scmp.eq.s32.totalorder %s23, 0
      %p113 = por %p111, %p112
      %s115 = sadd.s32 %s114, 1
      %p118 = scmp.eq.s32.totalorder %s17, 1
      %p119 = scmp.ne.s32.totalorder %s114, %s116
      %p120 = scmp.eq.s32.totalorder %s17, 0
      %p121 = por %p119, %p120
      %p122 = scmp.ne.s32.totalorder %s114, %s116
      %p123 = scmp.eq.s32.totalorder %s22, 1
      %p124 = por %p122, %p123
      %p125 = scmp.ne.s32.totalorder %s116, %s117
      %p126 = scmp.eq.s32.totalorder %s22, 0
      %p127 = por %p125, %p126
      %p128 = scmp.ne.s32.totalorder %s116, %s117
      %p129 = scmp.eq.s32.totalorder %s23, 1
      %p130 = por %p128, %p129
      %p132 = scmp.ne.s32.totalorder %s117, %s131
      %p133 = scmp.eq.s32.totalorder %s23, 0
      %p134 = por %p132, %p133
      %s136 = sadd.s32 %s135, 1
      %p139 = scmp.eq.s32.totalorder %s17, 1
      %p140 = scmp.ne.s32.totalorder %s135, %s137
      %p141 = scmp.eq.s32.totalorder %s17, 0
      %p142 = por %p140, %p141
      %p143 = scmp.ne.s32.totalorder %s135, %s137
      %p144 = scmp.eq.s32.totalorder %s22, 1
      %p145 = por %p143, %p144
      %p146 = scmp.ne.s32.totalorder %s137, %s138
      %p147 = scmp.eq.s32.totalorder %s22, 0
      %p148 = por %p146, %p147
      %p149 = scmp.ne.s32.totalorder %s137, %s138
      %p150 = scmp.eq.s32.totalorder %s23, 1
      %p151 = por %p149, %p150
      %p153 = scmp.ne.s32.totalorder %s138, %s152
      %p154 = scmp.eq.s32.totalorder %s23, 0
      %p155 = por %p153, %p154
      %s157 = sadd.s32 %s156, 1
      %p160 = scmp.eq.s32.totalorder %s17, 1
      %p161 = scmp.ne.s32.totalorder %s156, %s158
      %p162 = scmp.eq.s32.totalorder %s17, 0
      %p163 = por %p161, %p162
      %p164 = scmp.ne.s32.totalorder %s156, %s158
      %p165 = scmp.eq.s32.totalorder %s22, 1
      %p166 = por %p164, %p165
      %p167 = scmp.ne.s32.totalorder %s158, %s159
      %p168 = scmp.eq.s32.totalorder %s22, 0
      %p169 = por %p167, %p168
      %p170 = scmp.ne.s32.totalorder %s158, %s159
      %p171 = scmp.eq.s32.totalorder %s23, 1
      %p172 = por %p170, %p171
      %p174 = scmp.ne.s32.totalorder %s159, %s173
      %p175 = scmp.eq.s32.totalorder %s23, 0
      %p176 = por %p174, %p175
      %s178 = sadd.s32 %s177, 1
      %p181 = scmp.eq.s32.totalorder %s17, 1
      %p182 = scmp.ne.s32.totalorder %s177, %s179
      %p183 = scmp.eq.s32.totalorder %s17, 0
      %p184 = por %p182, %p183
      %p185 = scmp.ne.s32.totalorder %s177, %s179
      %p186 = scmp.eq.s32.totalorder %s22, 1
      %p187 = por %p185, %p186
      %p188 = scmp.ne.s32.totalorder %s179, %s180
      %p189 = scmp.eq.s32.totalorder %s22, 0
      %p190 = por %p188, %p189
      %p191 = scmp.ne.s32.totalorder %s179, %s180
      %p192 = scmp.eq.s32.totalorder %s23, 1
      %p193 = por %p191, %p192
      %p195 = scmp.ne.s32.totalorder %s180, %s194
      %p196 = scmp.eq.s32.totalorder %s23, 0
      %p197 = por %p195, %p196
      %s198 = ssub.s32 %s24, %s36
      %s199 = ssub.s32 %s25, %s32
      %s200 = sor.u32 %s198, %s199
      %p201 = scmp.eq.s32.totalorder %s200, 0
      %s203 = sadd.s32 %s202, 1
      %s204 = scalar_select %p201, %s202, %s203
      %p207 = pneg %p201
      %p208 = scmp.eq.s32.totalorder %s17, 1
      %p209 = por %p207, %p208
      %p210 = scmp.ne.s32.totalorder %s202, %s205
      %p211 = scmp.eq.s32.totalorder %s17, 0
      %p212 = por %p210, %p211
      %p213 = scmp.ne.s32.totalorder %s202, %s205
      %p214 = scmp.eq.s32.totalorder %s22, 1
      %p215 = por %p213, %p214
      %p216 = scmp.ne.s32.totalorder %s205, %s206
      %p217 = scmp.eq.s32.totalorder %s22, 0
      %p218 = por %p216, %p217
      %p219 = scmp.ne.s32.totalorder %s205, %s206
      %p220 = scmp.eq.s32.totalorder %s23, 1
      %p221 = por %p219, %p220
      %p223 = scmp.ne.s32.totalorder %s206, %s222
      %p224 = scmp.eq.s32.totalorder %s23, 0
      %p225 = por %p223, %p224
      %p226 = scmp.le.s32.totalorder 1, %s17
      %p227 = scmp.lt.s32.totalorder %s17, 3
      %p228 = pnand %p226, %p227
      %p229 = pneg %p228
      // Predicated region
      $region9: #{tpu_custom_call.1} parent=5 // pred_check
        _
      $region10: #{tpu_custom_call.1} parent=5 // pred_check_branch
        %231 = sbr.rel (%p228) target = $region12
      $region11: #{tpu_custom_call.1} parent=5 // pred_region
        %s232 = ssub.s32 %s17, 1
        // Predicated region
        $region13: #{tpu_custom_call.1} parent=11 // pred_check
          %p233 = pneg %p106
        $region14: #{tpu_custom_call.1} parent=11 // pred_check_branch
          %235 = sbr.rel (%p233) target = $region16
        $region15: #{tpu_custom_call.1} parent=11 // pred_region
          _
        $region16: #{tpu_custom_call.1} parent=11 // pred_fallthru
          _
        // Predicated region
        $region17: #{tpu_custom_call.1} parent=11 // pred_check
          %p236 = pneg %p127
        $region18: #{tpu_custom_call.1} parent=11 // pred_check_branch
          %238 = sbr.rel (%p236) target = $region20
        $region19: #{tpu_custom_call.1} parent=11 // pred_region
          _
        $region20: #{tpu_custom_call.1} parent=11 // pred_fallthru
          _
        // Predicated region
        $region21: #{tpu_custom_call.1} parent=11 // pred_check
          %p239 = pneg %p148
        $region22: #{tpu_custom_call.1} parent=11 // pred_check_branch
          %241 = sbr.rel (%p239) target = $region24
        $region23: #{tpu_custom_call.1} parent=11 // pred_region
          _
        $region24: #{tpu_custom_call.1} parent=11 // pred_fallthru
          _
        // Predicated region
        $region25: #{tpu_custom_call.1} parent=11 // pred_check
          %p242 = pneg %p169
        $region26: #{tpu_custom_call.1} parent=11 // pred_check_branch
          %244 = sbr.rel (%p242) target = $region28
        $region27: #{tpu_custom_call.1} parent=11 // pred_region
          _
        $region28: #{tpu_custom_call.1} parent=11 // pred_fallthru
          _
        // Predicated region
        $region29: #{tpu_custom_call.1} parent=11 // pred_check
          %p245 = pneg %p190
        $region30: #{tpu_custom_call.1} parent=11 // pred_check_branch
          %247 = sbr.rel (%p245) target = $region32
        $region31: #{tpu_custom_call.1} parent=11 // pred_region
          _
        $region32: #{tpu_custom_call.1} parent=11 // pred_fallthru
          _
      $region12: #{tpu_custom_call.1} parent=5 // pred_fallthru
        _
      %p248 = scmp.lt.s32.totalorder %s17, 2
      // Predicated region
      $region33: #{tpu_custom_call.1} parent=5 // pred_check
        %p249 = pneg %p248
      $region34: #{tpu_custom_call.1} parent=5 // pred_check_branch
        %251 = sbr.rel (%p249) target = $region36
      $region35: #{tpu_custom_call.1} parent=5 // pred_region
        // Predicated region
        $region37: #{tpu_custom_call.1} parent=35 // pred_check
          %p252 = pneg %p51
        $region38: #{tpu_custom_call.1} parent=35 // pred_check_branch
          %254 = sbr.rel (%p252) target = $region40
        $region39: #{tpu_custom_call.1} parent=35 // pred_region
          %s255 = sand.u32 %s41, 1
          %s256 = sand.u32 %s41, 1
          %s257 = smul.addr %s256, 8
          %s258 = scalar_lea.vmem [#allocation3], %s257
          %s259 = smul.u32 2, %s24
          %s260 = smul.addr %s259, 2
          %s261 = sadd.s32 %s25, %s260
          %s262 = smul.addr %s261, 4
          %s263 = scalar_lea.vmem %s0, %s262
          // Predicated region
          $region41: #{tpu_custom_call.1} parent=39 // pred_check
            _
          $region42: #{tpu_custom_call.1} parent=39 // pred_check_branch
            %265 = sbr.rel (0) target = $region44
          $region43: #{tpu_custom_call.1} parent=39 // pred_region
            // Predicated region
            $region45: #{tpu_custom_call.1} parent=43 // pred_check
              _
            $region46: #{tpu_custom_call.1} parent=43 // pred_check_branch
              %267 = sbr.rel target = $region48
            $region47: #{tpu_custom_call.1} parent=43 // pred_region
              // Predicated region
              $region60: #{tpu_custom_call.1} parent=47 // pred_check
                _
              $region61: #{tpu_custom_call.1} parent=47 // pred_check_branch
                %285 = sbr.rel (0) target = $region63
              $region62: #{tpu_custom_call.1} parent=47 // pred_region
                loop: start=0, step=1, limit=1
                $region64: #{tpu_custom_call.1} parent=62 // loop_pre_header
                  _
                $region65: #{tpu_custom_call.1} parent=62 // loop_header
                  %s287 = sphi 0, %s291
                  %p288 = scmp.ge.s32.totalorder %s287, 1
                  %s292 = sphi %s263, %s263
                  %s293 = sphi %s258, %s258
                $region66: #{tpu_custom_call.1} parent=62 // loop_header_branch
                  %290 = sbr.rel (%p288) target = $region70
                $region67: #{tpu_custom_call.1} parent=62 // loop_body
                  _
                $region68: #{tpu_custom_call.1} parent=62 // loop_footer
                  %s291 = sadd.s32 1, %s287
                $region69: #{tpu_custom_call.1} parent=62 // loop_footer_branch
                  %286 = sbr.rel target = $region65
                $region70: #{tpu_custom_call.1} parent=62 // loop_exit
                  _
                %s295 = ssub.s32 16, 1
                loop: start=0, step=1, limit=1
                $region71: #{tpu_custom_call.1} parent=62 // loop_pre_header
                  _
                $region72: #{tpu_custom_call.1} parent=62 // loop_header
                  %s297 = sphi 0, %s301
                  %p298 = scmp.ge.s32.totalorder %s297, 1
                  %s302 = sphi %s263, %s263
                  %s303 = sphi %s258, %s258
                $region73: #{tpu_custom_call.1} parent=62 // loop_header_branch
                  %300 = sbr.rel (%p298) target = $region77
                $region74: #{tpu_custom_call.1} parent=62 // loop_body
                  %v304 = vld [vmem:[%s302] sm:%s295]
                  %305 = vst [vmem:[%s303] sm:%s295] %v304
                  %v306 = vld [vmem:[%s302 + $0x8] sm:%s295]
                  %307 = vst [vmem:[%s303 + $0x4] sm:%s295] %v306
                $region75: #{tpu_custom_call.1} parent=62 // loop_footer
                  %s301 = sadd.s32 1, %s297
                $region76: #{tpu_custom_call.1} parent=62 // loop_footer_branch
                  %296 = sbr.rel target = $region72
                $region77: #{tpu_custom_call.1} parent=62 // loop_exit
                  _
              $region63: #{tpu_custom_call.1} parent=47 // pred_fallthru
                _
            $region48: #{tpu_custom_call.1} parent=43 // pred_fallthru
              _
            // Predicated region
            $region49: #{tpu_custom_call.1} parent=43 // pred_check
              _
            $region50: #{tpu_custom_call.1} parent=43 // pred_check_branch
              %269 = sbr.rel (0) target = $region52
            $region51: #{tpu_custom_call.1} parent=43 // pred_region
              %s271 = ssub.s32 16, 1
              loop: start=0, step=1, limit=1
              $region53: #{tpu_custom_call.1} parent=51 // loop_pre_header
                _
              $region54: #{tpu_custom_call.1} parent=51 // loop_header
                %s273 = sphi 0, %s277
                %p274 = scmp.ge.s32.totalorder %s273, 1
                %s278 = sphi %s263, %s263
                %s279 = sphi %s258, %s258
              $region55: #{tpu_custom_call.1} parent=51 // loop_header_branch
                %276 = sbr.rel (%p274) target = $region59
              $region56: #{tpu_custom_call.1} parent=51 // loop_body
                %v280 = vld [vmem:[%s278] sm:%s271]
                %281 = vst [vmem:[%s279] sm:%s271] %v280
                %v282 = vld [vmem:[%s278 + $0x8] sm:%s271]
                %283 = vst [vmem:[%s279 + $0x4] sm:%s271] %v282
              $region57: #{tpu_custom_call.1} parent=51 // loop_footer
                %s277 = sadd.s32 1, %s273
              $region58: #{tpu_custom_call.1} parent=51 // loop_footer_branch
                %272 = sbr.rel target = $region54
              $region59: #{tpu_custom_call.1} parent=51 // loop_exit
                _
            $region52: #{tpu_custom_call.1} parent=43 // pred_fallthru
              _
          $region44: #{tpu_custom_call.1} parent=39 // pred_fallthru
            _
          %308 = vnop
        $region40: #{tpu_custom_call.1} parent=35 // pred_fallthru
          _
        // Predicated region
        $region78: #{tpu_custom_call.1} parent=35 // pred_check
          %p309 = pneg %p79
        $region79: #{tpu_custom_call.1} parent=35 // pred_check_branch
          %311 = sbr.rel (%p309) target = $region81
        $region80: #{tpu_custom_call.1} parent=35 // pred_region
          %s312 = sand.u32 %s69, 1
          %s313 = sand.u32 %s69, 1
          %s314 = smul.addr %s313, 8
          %s315 = scalar_lea.vmem [#allocation4], %s314
          %s316 = smul.u32 2, %s24
          %s317 = smul.addr %s316, 2
          %s318 = sadd.s32 %s25, %s317
          %s319 = smul.addr %s318, 4
          %s320 = scalar_lea.vmem %s1, %s319
          // Predicated region
          $region82: #{tpu_custom_call.1} parent=80 // pred_check
            _
          $region83: #{tpu_custom_call.1} parent=80 // pred_check_branch
            %322 = sbr.rel (0) target = $region85
          $region84: #{tpu_custom_call.1} parent=80 // pred_region
            // Predicated region
            $region86: #{tpu_custom_call.1} parent=84 // pred_check
              _
            $region87: #{tpu_custom_call.1} parent=84 // pred_check_branch
              %324 = sbr.rel target = $region89
            $region88: #{tpu_custom_call.1} parent=84 // pred_region
              // Predicated region
              $region101: #{tpu_custom_call.1} parent=88 // pred_check
                _
              $region102: #{tpu_custom_call.1} parent=88 // pred_check_branch
                %342 = sbr.rel (0) target = $region104
              $region103: #{tpu_custom_call.1} parent=88 // pred_region
                loop: start=0, step=1, limit=1
                $region105: #{tpu_custom_call.1} parent=103 // loop_pre_header
                  _
                $region106: #{tpu_custom_call.1} parent=103 // loop_header
                  %s344 = sphi 0, %s348
                  %p345 = scmp.ge.s32.totalorder %s344, 1
                  %s349 = sphi %s320, %s320
                  %s350 = sphi %s315, %s315
                $region107: #{tpu_custom_call.1} parent=103 // loop_header_branch
                  %347 = sbr.rel (%p345) target = $region111
                $region108: #{tpu_custom_call.1} parent=103 // loop_body
                  _
                $region109: #{tpu_custom_call.1} parent=103 // loop_footer
                  %s348 = sadd.s32 1, %s344
                $region110: #{tpu_custom_call.1} parent=103 // loop_footer_branch
                  %343 = sbr.rel target = $region106
                $region111: #{tpu_custom_call.1} parent=103 // loop_exit
                  _
                %s352 = ssub.s32 16, 1
                loop: start=0, step=1, limit=1
                $region112: #{tpu_custom_call.1} parent=103 // loop_pre_header
                  _
                $region113: #{tpu_custom_call.1} parent=103 // loop_header
                  %s354 = sphi 0, %s358
                  %p355 = scmp.ge.s32.totalorder %s354, 1
                  %s359 = sphi %s320, %s320
                  %s360 = sphi %s315, %s315
                $region114: #{tpu_custom_call.1} parent=103 // loop_header_branch
                  %357 = sbr.rel (%p355) target = $region118
                $region115: #{tpu_custom_call.1} parent=103 // loop_body
                  %v361 = vld [vmem:[%s359] sm:%s352]
                  %362 = vst [vmem:[%s360] sm:%s352] %v361
                  %v363 = vld [vmem:[%s359 + $0x8] sm:%s352]
                  %364 = vst [vmem:[%s360 + $0x4] sm:%s352] %v363
                $region116: #{tpu_custom_call.1} parent=103 // loop_footer
                  %s358 = sadd.s32 1, %s354
                $region117: #{tpu_custom_call.1} parent=103 // loop_footer_branch
                  %353 = sbr.rel target = $region113
                $region118: #{tpu_custom_call.1} parent=103 // loop_exit
                  _
              $region104: #{tpu_custom_call.1} parent=88 // pred_fallthru
                _
            $region89: #{tpu_custom_call.1} parent=84 // pred_fallthru
              _
            // Predicated region
            $region90: #{tpu_custom_call.1} parent=84 // pred_check
              _
            $region91: #{tpu_custom_call.1} parent=84 // pred_check_branch
              %326 = sbr.rel (0) target = $region93
            $region92: #{tpu_custom_call.1} parent=84 // pred_region
              %s328 = ssub.s32 16, 1
              loop: start=0, step=1, limit=1
              $region94: #{tpu_custom_call.1} parent=92 // loop_pre_header
                _
              $region95: #{tpu_custom_call.1} parent=92 // loop_header
                %s330 = sphi 0, %s334
                %p331 = scmp.ge.s32.totalorder %s330, 1
                %s335 = sphi %s320, %s320
                %s336 = sphi %s315, %s315
              $region96: #{tpu_custom_call.1} parent=92 // loop_header_branch
                %333 = sbr.rel (%p331) target = $region100
              $region97: #{tpu_custom_call.1} parent=92 // loop_body
                %v337 = vld [vmem:[%s335] sm:%s328]
                %338 = vst [vmem:[%s336] sm:%s328] %v337
                %v339 = vld [vmem:[%s335 + $0x8] sm:%s328]
                %340 = vst [vmem:[%s336 + $0x4] sm:%s328] %v339
              $region98: #{tpu_custom_call.1} parent=92 // loop_footer
                %s334 = sadd.s32 1, %s330
              $region99: #{tpu_custom_call.1} parent=92 // loop_footer_branch
                %329 = sbr.rel target = $region95
              $region100: #{tpu_custom_call.1} parent=92 // loop_exit
                _
            $region93: #{tpu_custom_call.1} parent=84 // pred_fallthru
              _
          $region85: #{tpu_custom_call.1} parent=80 // pred_fallthru
            _
          %365 = vnop
        $region81: #{tpu_custom_call.1} parent=35 // pred_fallthru
          _
      $region36: #{tpu_custom_call.1} parent=5 // pred_fallthru
        _
      %p366 = scmp.le.s32.totalorder 1, %s17
      %p367 = scmp.lt.s32.totalorder %s17, 3
      %p368 = pnand %p366, %p367
      %p369 = pneg %p368
      // Predicated region
      $region119: #{tpu_custom_call.1} parent=5 // pred_check
        _
      $region120: #{tpu_custom_call.1} parent=5 // pred_check_branch
        %371 = sbr.rel (%p368) target = $region122
      $region121: #{tpu_custom_call.1} parent=5 // pred_region
        %s372 = ssub.s32 %s17, 1
        %s373 = sand.u32 %s44, 1
        %s374 = sand.u32 %s44, 1
        %s375 = smul.addr %s374, 8
        %s376 = scalar_lea.vmem [#allocation3], %s375
        // Predicated region
        $region123: #{tpu_custom_call.1} parent=121 // pred_check
          %p377 = pneg %p57
        $region124: #{tpu_custom_call.1} parent=121 // pred_check_branch
          %379 = sbr.rel (%p377) target = $region126
        $region125: #{tpu_custom_call.1} parent=121 // pred_region
          _
        $region126: #{tpu_custom_call.1} parent=121 // pred_fallthru
          _
        %s380 = sand.u32 %s72, 1
        %s381 = sand.u32 %s72, 1
        %s382 = smul.addr %s381, 8
        %s383 = scalar_lea.vmem [#allocation4], %s382
        // Predicated region
        $region127: #{tpu_custom_call.1} parent=121 // pred_check
          %p384 = pneg %p85
        $region128: #{tpu_custom_call.1} parent=121 // pred_check_branch
          %386 = sbr.rel (%p384) target = $region130
        $region129: #{tpu_custom_call.1} parent=121 // pred_region
          _
        $region130: #{tpu_custom_call.1} parent=121 // pred_fallthru
          _
        %s387 = sand.u32 %s44, 1
        %s388 = sand.u32 %s44, 1
        %s389 = smul.addr %s388, 8
        %s390 = scalar_lea.vmem [#allocation3], %s389
        %p391 = pneg %p57
        %p392 = pneg %p54
        %s393 = sand.u32 %s72, 1
        %s394 = sand.u32 %s72, 1
        %s395 = smul.addr %s394, 8
        %s396 = scalar_lea.vmem [#allocation4], %s395
        %p397 = pneg %p85
        %p398 = pneg %p82
        %p399 = pneg %p106
        %p400 = pneg %p103
        %p401 = pneg %p127
        %p402 = pneg %p124
        %p403 = pneg %p148
        %p404 = pneg %p145
        %p405 = pneg %p169
        %p406 = pneg %p166
        %p407 = pneg %p190
        %p408 = pneg %p187
        %p409 = pneg %p218
        %p410 = pneg %p215
        %s411 = sand.u32 %s205, 1
        %s412 = scalar_lea.sflag [#allocation6], %s411
        %s413 = sand.u32 %s205, 1
        %s414 = smul.addr %s413, 2
        %s415 = scalar_lea.vmem [#allocation5], %s414
        %s416 = smul.u32 2, %s26
        %s417 = smul.u32 2, %s26
        %s418 = smul.u32 2, %s26
        %s420 = sld [smem:[#allocation2]]
        %v421 = vld [vmem:[%s376] sm:$0xf]
        %v422 = vpack.c.bf16 %v421, %v421
        %v423 = vld [vmem:[%s383] sm:$0xf]
        %v424 = vpack.c.bf16 %v423, %v423
        %v425 = vld [vmem:[%s2] sm:$0xf]
        %v426 = vld [vmem:[%s2 + $0x4] sm:$0xf]
        %v427 = vld [vmem:[%s2 + $0x8] sm:$0xf]
        %v428 = vld [vmem:[%s2 + $0xc] sm:$0xf]
        %v429 = vld [vmem:[%s3] sm:$0xf]
        %v430 = vld [vmem:[%s3 + $0x4] sm:$0xf]
        %v431 = vld [vmem:[%s3 + $0x8] sm:$0xf]
        %v432 = vld [vmem:[%s3 + $0xc] sm:$0xf]
        %v437 = vunpack.c.l.b16 %v429
        %v438 = vunpack.c.l.b16 %v430
        %v439 = vunpack.c.l.b16 %v431
        %v440 = vunpack.c.l.b16 %v432
        %v441 = vpack.c.b16 %v438, %v437
        %v442 = vpack.c.b16 %v440, %v439
        %vm443 = vcmask 31744
        %v445 = vsel %vm443, %v441, 0
        %v448 = vsel %vm443, %v442, 0
        %vm450 = vcmask 1041408
        %v452 = vsel %vm450, %v424, 0
        %454 = vmatprep.subr.bf16.mxu0 0
        %455 = vmatpush1.bf16.msra.mxu0 0
        %456 = vmatprep.subr.bf16.mxu0 0
        %457 = vmatpush1.bf16.msra.mxu0 0
        %458 = vmatprep.subr.bf16.mxu0 0
        %459 = vmatpush1.bf16.msra.mxu0 0
        %460 = vmatprep.subr.bf16.mxu0 0
        %461 = vmatpush1.bf16.msra.mxu0 0
        %462 = vmatprep.subr.bf16.mxu0 0
        %463 = vmatpush1.bf16.msra.mxu0 0
        %464 = vmatprep.subr.bf16.mxu0 0
        %465 = vmatpush1.bf16.msra.mxu0 0
        %466 = vmatprep.subr.bf16.mxu0 0
        %467 = vmatpush1.bf16.msra.mxu0 0
        %468 = vmatprep.subr.bf16.mxu0 0
        %469 = vmatpush1.bf16.msra.mxu0 %v452
        %470 = vmatprep.subr.bf16.mxu0 0
        %471 = vmatpush2.bf16.msra.mxu0 0
        %472 = vmatprep.subr.bf16.mxu0 0
        %473 = vmatpush2.bf16.msra.mxu0 0
        %474 = vmatprep.subr.bf16.mxu0 0
        %475 = vmatpush2.bf16.msra.mxu0 0
        %476 = vmatprep.subr.bf16.mxu0 0
        %477 = vmatpush2.bf16.msra.mxu0 0
        %478 = vmatprep.subr.bf16.mxu0 0
        %479 = vmatpush2.bf16.msra.mxu0 0
        %480 = vmatprep.subr.bf16.mxu0 0
        %481 = vmatpush2.bf16.msra.mxu0 0
        %482 = vmatprep.subr.bf16.mxu0 0
        %483 = vmatpush2.bf16.msra.mxu0 0
        %484 = vmatprep.subr.bf16.mxu0 0
        %485 = vmatpush2.bf16.msra.mxu0 0
        %486 = vmatprep.mubr.bf16.mxu0 0
        %487 = vmatmul.mubr.bf16.gmra.mxu0 %v445
        %v488 = vpop.f32.mrf.mxu0
        %v489 = vadd.f32 0.0, %v488
        %v490 = vpop.f32.mrf.mxu0
        %v491 = vpop.f32.mrf.mxu0
        %v492 = vadd.f32 0.0, %v491
        %v493 = vpop.f32.mrf.mxu0
        %494 = vmatprep.mubr.bf16.mxu0 0
        %495 = vmatmul.mubr.bf16.gmra.mxu0 %v448
        %v496 = vpop.f32.mrf.mxu0
        %v497 = vadd.f32 0.0, %v496
        %v498 = vpop.f32.mrf.mxu0
        %v499 = vpop.f32.mrf.mxu0
        %v500 = vadd.f32 0.0, %v499
        %v501 = vpop.f32.mrf.mxu0
        %502 = vdwg.mxu0
        %v507 = vunpack.c.l.b16 %v425
        %v508 = vunpack.c.l.b16 %v426
        %v509 = vunpack.c.l.b16 %v427
        %v510 = vunpack.c.l.b16 %v428
        %v511 = vpack.c.b16 %v508, %v507
        %v512 = vpack.c.b16 %v510, %v509
        %v514 = vsel %vm443, %v511, 0
        %v517 = vsel %vm443, %v512, 0
        %v520 = vsel %vm450, %v422, 0
        %522 = vmatprep.subr.bf16.mxu0 0
        %523 = vmatpush1.bf16.msra.mxu0 0
        %524 = vmatprep.subr.bf16.mxu0 0
        %525 = vmatpush1.bf16.msra.mxu0 0
        %526 = vmatprep.subr.bf16.mxu0 0
        %527 = vmatpush1.bf16.msra.mxu0 0
        %528 = vmatprep.subr.bf16.mxu0 0
        %529 = vmatpush1.bf16.msra.mxu0 0
        %530 = vmatprep.subr.bf16.mxu0 0
        %531 = vmatpush1.bf16.msra.mxu0 0
        %532 = vmatprep.subr.bf16.mxu0 0
        %533 = vmatpush1.bf16.msra.mxu0 0
        %534 = vmatprep.subr.bf16.mxu0 0
        %535 = vmatpush1.bf16.msra.mxu0 0
        %536 = vmatprep.subr.bf16.mxu0 0
        %537 = vmatpush1.bf16.msra.mxu0 %v520
        %538 = vmatprep.subr.bf16.mxu0 0
        %539 = vmatpush2.bf16.msra.mxu0 0
        %540 = vmatprep.subr.bf16.mxu0 0
        %541 = vmatpush2.bf16.msra.mxu0 0
        %542 = vmatprep.subr.bf16.mxu0 0
        %543 = vmatpush2.bf16.msra.mxu0 0
        %544 = vmatprep.subr.bf16.mxu0 0
        %545 = vmatpush2.bf16.msra.mxu0 0
        %546 = vmatprep.subr.bf16.mxu0 0
        %547 = vmatpush2.bf16.msra.mxu0 0
        %548 = vmatprep.subr.bf16.mxu0 0
        %549 = vmatpush2.bf16.msra.mxu0 0
        %550 = vmatprep.subr.bf16.mxu0 0
        %551 = vmatpush2.bf16.msra.mxu0 0
        %552 = vmatprep.subr.bf16.mxu0 0
        %553 = vmatpush2.bf16.msra.mxu0 0
        %554 = vmatprep.mubr.bf16.mxu0 0
        %555 = vmatmul.mubr.bf16.gmra.mxu0 %v514
        %v556 = vpop.f32.mrf.mxu0
        %v557 = vadd.f32 %v489, %v556
        %v558 = vpop.f32.mrf.mxu0
        %v559 = vpop.f32.mrf.mxu0
        %v560 = vadd.f32 %v492, %v559
        %v561 = vpop.f32.mrf.mxu0
        %562 = vmatprep.mubr.bf16.mxu0 0
        %563 = vmatmul.mubr.bf16.gmra.mxu0 %v517
        %v564 = vpop.f32.mrf.mxu0
        %v565 = vadd.f32 %v497, %v564
        %v566 = vpop.f32.mrf.mxu0
        %v567 = vpop.f32.mrf.mxu0
        %v568 = vadd.f32 %v500, %v567
        %v569 = vpop.f32.mrf.mxu0
        %570 = vdwg.mxu0
        %v571 = vld [vmem:[%s4] sm:$0xff]
        %v572 = vld [vmem:[%s4 + $0x8] sm:$0xff]
        %v573 = vld [vmem:[%s4 + $0x10] sm:$0xff]
        %v574 = vld [vmem:[%s4 + $0x18] sm:$0xff]
        %576 = vset.pattern.permute.xlu0 0
        %577 = vperm.xlu0 %576, %v571
        %v578 = vpop.permute.xlu0 %577
        %581 = vset.pattern.permute.xlu0 0
        %582 = vperm.xlu0 %581, %v572
        %v583 = vpop.permute.xlu0 %582
        %586 = vset.pattern.permute.xlu0 0
        %587 = vperm.xlu0 %586, %v573
        %v588 = vpop.permute.xlu0 %587
        %591 = vset.pattern.permute.xlu0 0
        %592 = vperm.xlu0 %591, %v574
        %v593 = vpop.permute.xlu0 %592
        %v595 = vadd.f32 %v557, %v578
        %v596 = vadd.f32 %v560, %v583
        %v597 = vadd.f32 %v565, %v588
        %v598 = vadd.f32 %v568, %v593
        %v599 = vmax.f32 %v595, 0.0
        %v600 = vmax.f32 %v596, 0.0
        %v601 = vmax.f32 %v597, 0.0
        %v602 = vmax.f32 %v598, 0.0
        %v603 = vld [vmem:[%s5] sm:$0xff]
        %v604 = vld [vmem:[%s5 + $0x8] sm:$0xff]
        %v605 = vld [vmem:[%s5 + $0x10] sm:$0xff]
        %v606 = vld [vmem:[%s5 + $0x18] sm:$0xff]
        %608 = vset.pattern.permute.xlu0 0
        %609 = vperm.xlu0 %608, %v603
        %v610 = vpop.permute.xlu0 %609
        %613 = vset.pattern.permute.xlu0 0
        %614 = vperm.xlu0 %613, %v604
        %v615 = vpop.permute.xlu0 %614
        %618 = vset.pattern.permute.xlu0 0
        %619 = vperm.xlu0 %618, %v605
        %v620 = vpop.permute.xlu0 %619
        %623 = vset.pattern.permute.xlu0 0
        %624 = vperm.xlu0 %623, %v606
        %v625 = vpop.permute.xlu0 %624
        %v627 = vmul.f32 %v599, %v610
        %v628 = vmul.f32 %v600, %v615
        %v629 = vmul.f32 %v601, %v620
        %v630 = vmul.f32 %v602, %v625
        %v631 = vadd.f32 %v627, %v628
        %v632 = vadd.f32 %v631, %v629
        %v633 = vadd.f32 %v632, %v630
        %v634 = vrot.slane %v633, 4
        %v635 = vadd.f32 %v633, %v634
        %v636 = vrot.slane %v635, 2
        %v637 = vadd.f32 %v635, %v636
        %v638 = vrot.slane %v637, 1
        %v639 = vadd.f32 %v637, %v638
        %v640 = vstv %s420
        %v641 = vadd.f32 %v639, %v640
        %642 = vst [vmem:[%s415] sm:$0x1] %v641
        %s643 = scalar_lea.vmem %s376, 4 [#allocation3]
        %v644 = vld [vmem:[%s643] sm:$0xf]
        %v645 = vpack.c.bf16 %v644, %v644
        %s646 = scalar_lea.vmem %s383, 4 [#allocation4]
        %v647 = vld [vmem:[%s646] sm:$0xf]
        %v648 = vpack.c.bf16 %v647, %v647
        %v649 = vld [vmem:[%s2] sm:$0xf]
        %v650 = vld [vmem:[%s2 + $0x4] sm:$0xf]
        %v651 = vld [vmem:[%s2 + $0x8] sm:$0xf]
        %v652 = vld [vmem:[%s2 + $0xc] sm:$0xf]
        %v653 = vld [vmem:[%s3] sm:$0xf]
        %v654 = vld [vmem:[%s3 + $0x4] sm:$0xf]
        %v655 = vld [vmem:[%s3 + $0x8] sm:$0xf]
        %v656 = vld [vmem:[%s3 + $0xc] sm:$0xf]
        %v661 = vunpack.c.l.b16 %v653
        %v662 = vunpack.c.l.b16 %v654
        %v663 = vunpack.c.l.b16 %v655
        %v664 = vunpack.c.l.b16 %v656
        %v665 = vpack.c.b16 %v662, %v661
        %v666 = vpack.c.b16 %v664, %v663
        %v668 = vsel %vm443, %v665, 0
        %v671 = vsel %vm443, %v666, 0
        %v674 = vsel %vm450, %v648, 0
        %676 = vmatprep.subr.bf16.mxu0 0
        %677 = vmatpush1.bf16.msra.mxu0 0
        %678 = vmatprep.subr.bf16.mxu0 0
        %679 = vmatpush1.bf16.msra.mxu0 0
        %680 = vmatprep.subr.bf16.mxu0 0
        %681 = vmatpush1.bf16.msra.mxu0 0
        %682 = vmatprep.subr.bf16.mxu0 0
        %683 = vmatpush1.bf16.msra.mxu0 0
        %684 = vmatprep.subr.bf16.mxu0 0
        %685 = vmatpush1.bf16.msra.mxu0 0
        %686 = vmatprep.subr.bf16.mxu0 0
        %687 = vmatpush1.bf16.msra.mxu0 0
        %688 = vmatprep.subr.bf16.mxu0 0
        %689 = vmatpush1.bf16.msra.mxu0 0
        %690 = vmatprep.subr.bf16.mxu0 0
        %691 = vmatpush1.bf16.msra.mxu0 %v674
        %692 = vmatprep.subr.bf16.mxu0 0
        %693 = vmatpush2.bf16.msra.mxu0 0
        %694 = vmatprep.subr.bf16.mxu0 0
        %695 = vmatpush2.bf16.msra.mxu0 0
        %696 = vmatprep.subr.bf16.mxu0 0
        %697 = vmatpush2.bf16.msra.mxu0 0
        %698 = vmatprep.subr.bf16.mxu0 0
        %699 = vmatpush2.bf16.msra.mxu0 0
        %700 = vmatprep.subr.bf16.mxu0 0
        %701 = vmatpush2.bf16.msra.mxu0 0
        %702 = vmatprep.subr.bf16.mxu0 0
        %703 = vmatpush2.bf16.msra.mxu0 0
        %704 = vmatprep.subr.bf16.mxu0 0
        %705 = vmatpush2.bf16.msra.mxu0 0
        %706 = vmatprep.subr.bf16.mxu0 0
        %707 = vmatpush2.bf16.msra.mxu0 0
        %708 = vmatprep.mubr.bf16.mxu0 0
        %709 = vmatmul.mubr.bf16.gmra.mxu0 %v668
        %v710 = vpop.f32.mrf.mxu0
        %v711 = vadd.f32 0.0, %v710
        %v712 = vpop.f32.mrf.mxu0
        %v713 = vpop.f32.mrf.mxu0
        %v714 = vadd.f32 0.0, %v713
        %v715 = vpop.f32.mrf.mxu0
        %716 = vmatprep.mubr.bf16.mxu0 0
        %717 = vmatmul.mubr.bf16.gmra.mxu0 %v671
        %v718 = vpop.f32.mrf.mxu0
        %v719 = vadd.f32 0.0, %v718
        %v720 = vpop.f32.mrf.mxu0
        %v721 = vpop.f32.mrf.mxu0
        %v722 = vadd.f32 0.0, %v721
        %v723 = vpop.f32.mrf.mxu0
        %724 = vdwg.mxu0
        %v729 = vunpack.c.l.b16 %v649
        %v730 = vunpack.c.l.b16 %v650
        %v731 = vunpack.c.l.b16 %v651
        %v732 = vunpack.c.l.b16 %v652
        %v733 = vpack.c.b16 %v730, %v729
        %v734 = vpack.c.b16 %v732, %v731
        %v736 = vsel %vm443, %v733, 0
        %v739 = vsel %vm443, %v734, 0
        %v742 = vsel %vm450, %v645, 0
        %744 = vmatprep.subr.bf16.mxu0 0
        %745 = vmatpush1.bf16.msra.mxu0 0
        %746 = vmatprep.subr.bf16.mxu0 0
        %747 = vmatpush1.bf16.msra.mxu0 0
        %748 = vmatprep.subr.bf16.mxu0 0
        %749 = vmatpush1.bf16.msra.mxu0 0
        %750 = vmatprep.subr.bf16.mxu0 0
        %751 = vmatpush1.bf16.msra.mxu0 0
        %752 = vmatprep.subr.bf16.mxu0 0
        %753 = vmatpush1.bf16.msra.mxu0 0
        %754 = vmatprep.subr.bf16.mxu0 0
        %755 = vmatpush1.bf16.msra.mxu0 0
        %756 = vmatprep.subr.bf16.mxu0 0
        %757 = vmatpush1.bf16.msra.mxu0 0
        %758 = vmatprep.subr.bf16.mxu0 0
        %759 = vmatpush1.bf16.msra.mxu0 %v742
        %760 = vmatprep.subr.bf16.mxu0 0
        %761 = vmatpush2.bf16.msra.mxu0 0
        %762 = vmatprep.subr.bf16.mxu0 0
        %763 = vmatpush2.bf16.msra.mxu0 0
        %764 = vmatprep.subr.bf16.mxu0 0
        %765 = vmatpush2.bf16.msra.mxu0 0
        %766 = vmatprep.subr.bf16.mxu0 0
        %767 = vmatpush2.bf16.msra.mxu0 0
        %768 = vmatprep.subr.bf16.mxu0 0
        %769 = vmatpush2.bf16.msra.mxu0 0
        %770 = vmatprep.subr.bf16.mxu0 0
        %771 = vmatpush2.bf16.msra.mxu0 0
        %772 = vmatprep.subr.bf16.mxu0 0
        %773 = vmatpush2.bf16.msra.mxu0 0
        %774 = vmatprep.subr.bf16.mxu0 0
        %775 = vmatpush2.bf16.msra.mxu0 0
        %776 = vmatprep.mubr.bf16.mxu0 0
        %777 = vmatmul.mubr.bf16.gmra.mxu0 %v736
        %v778 = vpop.f32.mrf.mxu0
        %v779 = vadd.f32 %v711, %v778
        %v780 = vpop.f32.mrf.mxu0
        %v781 = vpop.f32.mrf.mxu0
        %v782 = vadd.f32 %v714, %v781
        %v783 = vpop.f32.mrf.mxu0
        %784 = vmatprep.mubr.bf16.mxu0 0
        %785 = vmatmul.mubr.bf16.gmra.mxu0 %v739
        %v786 = vpop.f32.mrf.mxu0
        %v787 = vadd.f32 %v719, %v786
        %v788 = vpop.f32.mrf.mxu0
        %v789 = vpop.f32.mrf.mxu0
        %v790 = vadd.f32 %v722, %v789
        %v791 = vpop.f32.mrf.mxu0
        %792 = vdwg.mxu0
        %v793 = vld [vmem:[%s4] sm:$0xff]
        %v794 = vld [vmem:[%s4 + $0x8] sm:$0xff]
        %v795 = vld [vmem:[%s4 + $0x10] sm:$0xff]
        %v796 = vld [vmem:[%s4 + $0x18] sm:$0xff]
        %798 = vset.pattern.permute.xlu0 0
        %799 = vperm.xlu0 %798, %v793
        %v800 = vpop.permute.xlu0 %799
        %803 = vset.pattern.permute.xlu0 0
        %804 = vperm.xlu0 %803, %v794
        %v805 = vpop.permute.xlu0 %804
        %808 = vset.pattern.permute.xlu0 0
        %809 = vperm.xlu0 %808, %v795
        %v810 = vpop.permute.xlu0 %809
        %813 = vset.pattern.permute.xlu0 0
        %814 = vperm.xlu0 %813, %v796
        %v815 = vpop.permute.xlu0 %814
        %v817 = vadd.f32 %v779, %v800
        %v818 = vadd.f32 %v782, %v805
        %v819 = vadd.f32 %v787, %v810
        %v820 = vadd.f32 %v790, %v815
        %v821 = vmax.f32 %v817, 0.0
        %v822 = vmax.f32 %v818, 0.0
        %v823 = vmax.f32 %v819, 0.0
        %v824 = vmax.f32 %v820, 0.0
        %v825 = vld [vmem:[%s5] sm:$0xff]
        %v826 = vld [vmem:[%s5 + $0x8] sm:$0xff]
        %v827 = vld [vmem:[%s5 + $0x10] sm:$0xff]
        %v828 = vld [vmem:[%s5 + $0x18] sm:$0xff]
        %830 = vset.pattern.permute.xlu0 0
        %831 = vperm.xlu0 %830, %v825
        %v832 = vpop.permute.xlu0 %831
        %835 = vset.pattern.permute.xlu0 0
        %836 = vperm.xlu0 %835, %v826
        %v837 = vpop.permute.xlu0 %836
        %840 = vset.pattern.permute.xlu0 0
        %841 = vperm.xlu0 %840, %v827
        %v842 = vpop.permute.xlu0 %841
        %845 = vset.pattern.permute.xlu0 0
        %846 = vperm.xlu0 %845, %v828
        %v847 = vpop.permute.xlu0 %846
        %v849 = vmul.f32 %v821, %v832
        %v850 = vmul.f32 %v822, %v837
        %v851 = vmul.f32 %v823, %v842
        %v852 = vmul.f32 %v824, %v847
        %v853 = vadd.f32 %v849, %v850
        %v854 = vadd.f32 %v853, %v851
        %v855 = vadd.f32 %v854, %v852
        %v856 = vrot.slane %v855, 4
        %v857 = vadd.f32 %v855, %v856
        %v858 = vrot.slane %v857, 2
        %v859 = vadd.f32 %v857, %v858
        %v860 = vrot.slane %v859, 1
        %v861 = vadd.f32 %v859, %v860
        %v862 = vadd.f32 %v861, %v640
        %s863 = scalar_lea.vmem %s415, 1 [#allocation5]
        %864 = vst [vmem:[%s863] sm:$0x1] %v862
        %s865 = sand.u32 %s205, 1
        %s866 = scalar_lea.sflag [#allocation6], %s865
        %s867 = sand.u32 %s205, 1
        %s868 = smul.addr %s867, 2
        %s869 = scalar_lea.vmem [#allocation5], %s868
        // Predicated region
        $region131: #{tpu_custom_call.1} parent=121 // pred_check
          %p870 = pneg %p215
        $region132: #{tpu_custom_call.1} parent=121 // pred_check_branch
          %872 = sbr.rel (%p870) target = $region134
        $region133: #{tpu_custom_call.1} parent=121 // pred_region
          %s873 = smul.u32 2, %s26
          %s875 = ssub.s32 32, 32
          %876 = vsyncadd %s866, %s875
          %s877 = smul.addr %s873, 2
          %s878 = sadd.s32 %s27, %s877
          %s879 = smul.addr %s878, 16
          %s880 = scalar_lea.hbm %s7, %s879
          %s881 = sshll.u32 %s869, 4
          %s882 = int_to_ptr.vmem [resolvable:$true] %s881
          %887 = dma.vmem_to_hbm [thread:$0]  %s882, 32, %s880, %s866, 16, 32, 1
        $region134: #{tpu_custom_call.1} parent=121 // pred_fallthru
          _
      $region122: #{tpu_custom_call.1} parent=5 // pred_fallthru
        _
      %p888 = scmp.le.s32.totalorder 2, %s17
      // Predicated region
      $region135: #{tpu_custom_call.1} parent=5 // pred_check
        %p889 = pneg %p888
      $region136: #{tpu_custom_call.1} parent=5 // pred_check_branch
        %891 = sbr.rel (%p889) target = $region138
      $region137: #{tpu_custom_call.1} parent=5 // pred_region
        %s892 = ssub.s32 %s17, 2
        // Predicated region
        $region139: #{tpu_custom_call.1} parent=137 // pred_check
          %p893 = pneg %p221
        $region140: #{tpu_custom_call.1} parent=137 // pred_check_branch
          %895 = sbr.rel (%p893) target = $region142
        $region141: #{tpu_custom_call.1} parent=137 // pred_region
          %s896 = sand.u32 %s206, 1
          %s897 = scalar_lea.sflag [#allocation6], %s896
          %s898 = sand.u32 %s206, 1
          %s899 = smul.addr %s898, 2
          %s900 = scalar_lea.vmem [#allocation5], %s899
          %901 = dma.done %s897, 32
        $region142: #{tpu_custom_call.1} parent=137 // pred_fallthru
          _
      $region138: #{tpu_custom_call.1} parent=5 // pred_fallthru
        _
    $region6: #{tpu_custom_call.1} parent=1 // loop_footer
      %s21 = sadd.s32 1, %s17
    $region7: #{tpu_custom_call.1} parent=1 // loop_footer_branch
      %16 = sbr.rel target = $region3
    $region8: #{tpu_custom_call.1} parent=1 // loop_exit
      _
    %902 = vsyncpa [#allocation6], 1
    %s903 = scalar_lea.sflag [#allocation6], 1
    %904 = vsyncpa %s903, 1

</llo_original>
